<compile_context>
chip_gen: v6e
topology: v6e:2x2x1
jax: 0.10.0
libtpu: 0.0.40
codegen_flags: <defaults>
</compile_context>

<pallas_src>
import jax
import jax.numpy as jnp
from jax.experimental import pallas as pl
from jax.experimental.pallas import tpu as pltpu

LN_EPS = 1e-5  # torch.nn.LayerNorm default


def _fourier_self_fusion_kernel(x_ref, whid_ref, cs_ref, ss_ref,
                                gamma_ref, beta_ref, o_ref):
    S, H = x_ref.shape                      # static block shape (batch squeezed)
    x = x_ref[...]                          # (S, H) bf16 -- MXU operand as loaded

    # Stage 1: hidden-dim mix.  Whid = [Ch | Sh]  (H, 2H), bf16.
    # p = [X@Ch | X@Sh], lane-packed, f32 accumulation on the MXU.
    p = jnp.dot(x, whid_ref[...], preferred_element_type=jnp.float32)   # (S, 2H)
    pb = p.astype(jnp.bfloat16)

    # Stage 2: sequence-dim mix.  Two plain 2-D dots on aligned lane slices
    # (H is a multiple of 128, so pb[:, :H] / pb[:, H:] are cheap lane views).
    fourier = (
        jnp.dot(cs_ref[...], pb[:, :H], preferred_element_type=jnp.float32)
        - jnp.dot(ss_ref[...], pb[:, H:], preferred_element_type=jnp.float32)
    )                                                                    # (S, H) f32

    # Residual + LayerNorm over the hidden dim (f32 math).  Centered two-pass
    # variance kept for numerical stability (per review: don't trade stability
    # for the one-traversal-stats micro-opt unless the XLU slot is profiled hot).
    z = x.astype(jnp.float32) + fourier
    mean = jnp.mean(z, axis=-1, keepdims=True)
    centered = z - mean
    var = jnp.mean(centered * centered, axis=-1, keepdims=True)
    normed = centered * jax.lax.rsqrt(var + LN_EPS)
    out = normed * gamma_ref[...] + beta_ref[...]          # gamma/beta: (1, H) f32

    o_ref[...] = out.astype(o_ref.dtype)


def _dft_cos_sin(n):
    """cos/sin DFT matrices; (i*j) reduced mod n in int32 before scaling."""
    if n > 46340:  # (n-1)**2 must stay inside int32 (review correctness concern)
        raise ValueError(f"DFT size {n} too large for int32 angle construction")
    idx = jnp.arange(n, dtype=jnp.int32)
    prod_mod = (idx[:, None] * idx[None, :]) % n           # exact in int32
    ang = (2.0 * jnp.pi / n) * prod_mod.astype(jnp.float32)
    return jnp.cos(ang), jnp.sin(ang)


def make_fourier_self_fusion(seq_len, hidden):
    """Builds the DFT weights once; returns a jitted apply(x, gamma, beta)."""
    S, H = seq_len, hidden
    if H % 128 != 0:
        raise ValueError("hidden size must be a multiple of 128 (lane-dense)")

    cs, ss = _dft_cos_sin(S)                               # (S, S) f32
    ch, sh = _dft_cos_sin(H)                               # (H, H) f32
    # bf16 MXU weights; see main() for the accuracy note / tolerance.
    whid = jnp.concatenate([ch, sh], axis=1).astype(jnp.bfloat16)   # (H, 2H)
    cs_b = cs.astype(jnp.bfloat16)                          # (S, S)
    ss_b = ss.astype(jnp.bfloat16)                          # (S, S)

    def apply(x, gamma, beta):
        B = x.shape[0]
        assert x.shape == (B, S, H), f"expected {(B, S, H)}, got {x.shape}"
        gamma2d = gamma.reshape(1, H).astype(jnp.float32)
        beta2d = beta.reshape(1, H).astype(jnp.float32)

        itemsize = x.dtype.itemsize
        flops = int(B) * (4 * S * H * H + 4 * S * S * H)   # stage1 + stage2 dots
        bytes_accessed = int(
            2 * B * S * H * itemsize                        # x in + out
            + (2 * H * H + 2 * S * S) * 2                   # bf16 DFT weights
            + 2 * H * 4)                                    # gamma, beta

        return pl.pallas_call(
            _fourier_self_fusion_kernel,
            out_shape=jax.ShapeDtypeStruct((B, S, H), x.dtype),
            grid=(B,),
            in_specs=[
                pl.BlockSpec((None, S, H), lambda b: (b, 0, 0)),   # x (1 batch row)
                pl.BlockSpec((H, 2 * H), lambda b: (0, 0)),        # [Ch|Sh] resident
                pl.BlockSpec((S, S), lambda b: (0, 0)),            # Cs resident
                pl.BlockSpec((S, S), lambda b: (0, 0)),            # Ss resident
                pl.BlockSpec((1, H), lambda b: (0, 0)),            # gamma
                pl.BlockSpec((1, H), lambda b: (0, 0)),            # beta
            ],
            out_specs=pl.BlockSpec((None, S, H), lambda b: (b, 0, 0)),
            compiler_params=pltpu.CompilerParams(
                dimension_semantics=("parallel",),
                vmem_limit_bytes=32 * 1024 * 1024),
            cost_estimate=pl.CostEstimate(
                flops=flops,
                transcendentals=int(B * S),
                bytes_accessed=bytes_accessed),
        )(x, whid, cs_b, ss_b, gamma2d, beta2d)

    return jax.jit(apply)


def _reference(x, gamma, beta):
    # Pure-JAX reference: Re(fft over hidden then seq), residual, LayerNorm.
    f = jnp.real(jnp.fft.fft(jnp.fft.fft(x, axis=-1), axis=-2))
    z = x + f
    mean = jnp.mean(z, axis=-1, keepdims=True)
    var = jnp.mean((z - mean) ** 2, axis=-1, keepdims=True)
    return (z - mean) / jnp.sqrt(var + LN_EPS) * gamma + beta


if __name__ == "__main__":
    key = jax.random.PRNGKey(0)
    # Small demo shapes: hidden=128 keeps every load/store/LayerNorm lane-dense,
    # batch=8 -> grid=(8,) gives >= 8 pipelined steps (>= 4 per v7x TensorCore).
    B, S, H = 8, 8, 128

    kx, kg, kb = jax.random.split(key, 3)
    x_f32 = jax.random.normal(kx, (B, S, H), dtype=jnp.float32)
    x = x_f32.astype(jnp.bfloat16)          # bf16 activations at the kernel boundary
    gamma = 1.0 + 0.1 * jax.random.normal(kg, (H,), dtype=jnp.float32)
    beta = 0.1 * jax.random.normal(kb, (H,), dtype=jnp.float32)

    fuse = make_fourier_self_fusion(seq_len=S, hidden=H)
    out = jax.block_until_ready(fuse(x, gamma, beta))

    # Reference on the same bf16 input bits (f32 math inside jnp.fft).
    ref = _reference(x.astype(jnp.float32), gamma, beta)
    out_f32 = out.astype(jnp.float32)
    assert out.shape == ref.shape
    err = jnp.max(jnp.abs(out_f32 - ref))
    # bf16 DFT weights / bf16 intermediates / bf16 output => loose tolerance vs
    # the f32 FFT reference.  Error grows ~sqrt(contraction depth); re-validate
    # at production S/H or switch to f32 weights (precision=HIGHEST) if tighter
    # accuracy is required.
    assert jnp.allclose(out_f32, ref, atol=5e-2, rtol=5e-2), f"mismatch, max err {err}"
    print("KERNEL_OK")
</pallas_src>

<mosaic_0001>
module attributes {stable_mosaic.version = 11 : i64} {
  func.func @_fourier_self_fusion_kernel(%arg0: i32, %arg1: memref<1x8x128xbf16, #tpu.memory_space<vmem>>, %arg2: memref<128x256xbf16, #tpu.memory_space<vmem>>, %arg3: memref<8x8xbf16, #tpu.memory_space<vmem>>, %arg4: memref<8x8xbf16, #tpu.memory_space<vmem>>, %arg5: memref<1x128xf32, #tpu.memory_space<vmem>>, %arg6: memref<1x128xf32, #tpu.memory_space<vmem>>, %arg7: memref<1x8x128xbf16, #tpu.memory_space<vmem>>) attributes {dimension_semantics = [#tpu.dimension_semantics<parallel>], iteration_bounds = array<i64: 8>, scalar_prefetch = 0 : i64, scratch_operands = 0 : i64, tpu.core_type = #tpu.core_type<tc>, window_params = [{transform_indices = @transform_0, window_bounds = array<i64: 1, 8, 128>}, {pipeline_mode = #tpu.pipeline_mode<synchronous>, transform_indices = @transform_1, window_bounds = array<i64: 128, 256>}, {pipeline_mode = #tpu.pipeline_mode<synchronous>, transform_indices = @transform_2, window_bounds = array<i64: 8, 8>}, {pipeline_mode = #tpu.pipeline_mode<synchronous>, transform_indices = @transform_3, window_bounds = array<i64: 8, 8>}, {pipeline_mode = #tpu.pipeline_mode<synchronous>, transform_indices = @transform_4, window_bounds = array<i64: 1, 128>}, {pipeline_mode = #tpu.pipeline_mode<synchronous>, transform_indices = @transform_5, window_bounds = array<i64: 1, 128>}, {transform_indices = @transform_6, window_bounds = array<i64: 1, 8, 128>}]} {
    %c0 = arith.constant 0 : index
    %c0_0 = arith.constant 0 : index
    %c0_1 = arith.constant 0 : index
    %0 = vector.load %arg1[%c0, %c0_0, %c0_1] : memref<1x8x128xbf16, #tpu.memory_space<vmem>>, vector<1x8x128xbf16>
    %1 = vector.shape_cast %0 : vector<1x8x128xbf16> to vector<8x128xbf16>
    %c0_2 = arith.constant 0 : index
    %c0_3 = arith.constant 0 : index
    %2 = vector.load %arg2[%c0_2, %c0_3] : memref<128x256xbf16, #tpu.memory_space<vmem>>, vector<128x256xbf16>
    %cst = arith.constant dense<0.000000e+00> : vector<8x256xf32>
    %3 = tpu.matmul %1, %2, %cst {dimension_numbers = #tpu.dot_dimension_numbers<[1], [0], [0], [1], [0, 0, 1, 1], [], []>} : vector<8x128xbf16>, vector<128x256xbf16>, vector<8x256xf32> -> vector<8x256xf32>
    %4 = arith.truncf %3 : vector<8x256xf32> to vector<8x256xbf16>
    %c0_4 = arith.constant 0 : index
    %c0_5 = arith.constant 0 : index
    %5 = vector.load %arg3[%c0_4, %c0_5] : memref<8x8xbf16, #tpu.memory_space<vmem>>, vector<8x8xbf16>
    %6 = vector.extract_strided_slice %4 {offsets = [0, 0], sizes = [8, 128], strides = [1, 1]} : vector<8x256xbf16> to vector<8x128xbf16>
    %cst_6 = arith.constant dense<0.000000e+00> : vector<8x128xf32>
    %7 = tpu.matmul %5, %6, %cst_6 {dimension_numbers = #tpu.dot_dimension_numbers<[1], [0], [0], [1], [0, 0, 1, 1], [], []>} : vector<8x8xbf16>, vector<8x128xbf16>, vector<8x128xf32> -> vector<8x128xf32>
    %c0_7 = arith.constant 0 : index
    %c0_8 = arith.constant 0 : index
    %8 = vector.load %arg4[%c0_7, %c0_8] : memref<8x8xbf16, #tpu.memory_space<vmem>>, vector<8x8xbf16>
    %9 = vector.extract_strided_slice %4 {offsets = [0, 128], sizes = [8, 128], strides = [1, 1]} : vector<8x256xbf16> to vector<8x128xbf16>
    %cst_9 = arith.constant dense<0.000000e+00> : vector<8x128xf32>
    %10 = tpu.matmul %8, %9, %cst_9 {dimension_numbers = #tpu.dot_dimension_numbers<[1], [0], [0], [1], [0, 0, 1, 1], [], []>} : vector<8x8xbf16>, vector<8x128xbf16>, vector<8x128xf32> -> vector<8x128xf32>
    %11 = arith.subf %7, %10 : vector<8x128xf32>
    %12 = arith.extf %1 : vector<8x128xbf16> to vector<8x128xf32>
    %13 = arith.addf %12, %11 : vector<8x128xf32>
    %cst_10 = arith.constant dense<0.000000e+00> : vector<8xf32>
    %14 = vector.multi_reduction <add>, %13, %cst_10 [1] : vector<8x128xf32> to vector<8xf32>
    %15 = vector.shape_cast %14 : vector<8xf32> to vector<8x1xf32>
    %cst_11 = arith.constant 1.280000e+02 : f32
    %16 = vector.broadcast %cst_11 : f32 to vector<8x1xf32>
    %17 = arith.divf %15, %16 : vector<8x1xf32>
    %18 = vector.broadcast %17 : vector<8x1xf32> to vector<8x128xf32>
    %19 = arith.subf %13, %18 : vector<8x128xf32>
    %20 = arith.mulf %19, %19 : vector<8x128xf32>
    %cst_12 = arith.constant dense<0.000000e+00> : vector<8xf32>
    %21 = vector.multi_reduction <add>, %20, %cst_12 [1] : vector<8x128xf32> to vector<8xf32>
    %22 = vector.shape_cast %21 : vector<8xf32> to vector<8x1xf32>
    %cst_13 = arith.constant 1.280000e+02 : f32
    %23 = vector.broadcast %cst_13 : f32 to vector<8x1xf32>
    %24 = arith.divf %22, %23 : vector<8x1xf32>
    %cst_14 = arith.constant 9.99999974E-6 : f32
    %25 = vector.broadcast %cst_14 : f32 to vector<8x1xf32>
    %26 = arith.addf %24, %25 : vector<8x1xf32>
    %27 = math.rsqrt %26 : vector<8x1xf32>
    %28 = vector.broadcast %27 : vector<8x1xf32> to vector<8x128xf32>
    %29 = arith.mulf %19, %28 : vector<8x128xf32>
    %c0_15 = arith.constant 0 : index
    %c0_16 = arith.constant 0 : index
    %30 = vector.load %arg5[%c0_15, %c0_16] : memref<1x128xf32, #tpu.memory_space<vmem>>, vector<1x128xf32>
    %31 = vector.broadcast %30 : vector<1x128xf32> to vector<8x128xf32>
    %32 = arith.mulf %29, %31 : vector<8x128xf32>
    %c0_17 = arith.constant 0 : index
    %c0_18 = arith.constant 0 : index
    %33 = vector.load %arg6[%c0_17, %c0_18] : memref<1x128xf32, #tpu.memory_space<vmem>>, vector<1x128xf32>
    %34 = vector.broadcast %33 : vector<1x128xf32> to vector<8x128xf32>
    %35 = arith.addf %32, %34 : vector<8x128xf32>
    %36 = arith.truncf %35 : vector<8x128xf32> to vector<8x128xbf16>
    %c0_19 = arith.constant 0 : index
    %c0_20 = arith.constant 0 : index
    %c0_21 = arith.constant 0 : index
    %37 = vector.load %arg7[%c0_19, %c0_20, %c0_21] : memref<1x8x128xbf16, #tpu.memory_space<vmem>>, vector<1x8x128xbf16>
    %38 = vector.shape_cast %37 : vector<1x8x128xbf16> to vector<8x128xbf16>
    %39 = vector.shape_cast %36 : vector<8x128xbf16> to vector<1x8x128xbf16>
    tpu.vector_store %arg7[%c0_19, %c0_20, %c0_21], %39 {strides = array<i32>} : memref<1x8x128xbf16, #tpu.memory_space<vmem>>, vector<1x8x128xbf16>,
    return
  }
  func.func @transform_0(%arg0: i32) -> (i32, i32, i32) {
    %c0_i32 = arith.constant 0 : i32
    %c0_i32_0 = arith.constant 0 : i32
    %c0_i32_1 = arith.constant 0 : i32
    return %arg0, %c0_i32, %c0_i32_0 : i32, i32, i32
  }
  func.func @transform_1(%arg0: i32) -> (i32, i32) {
    %c0_i32 = arith.constant 0 : i32
    %c0_i32_0 = arith.constant 0 : i32
    %c0_i32_1 = arith.constant 0 : i32
    return %c0_i32, %c0_i32_0 : i32, i32
  }
  func.func @transform_2(%arg0: i32) -> (i32, i32) {
    %c0_i32 = arith.constant 0 : i32
    %c0_i32_0 = arith.constant 0 : i32
    %c0_i32_1 = arith.constant 0 : i32
    return %c0_i32, %c0_i32_0 : i32, i32
  }
  func.func @transform_3(%arg0: i32) -> (i32, i32) {
    %c0_i32 = arith.constant 0 : i32
    %c0_i32_0 = arith.constant 0 : i32
    %c0_i32_1 = arith.constant 0 : i32
    return %c0_i32, %c0_i32_0 : i32, i32
  }
  func.func @transform_4(%arg0: i32) -> (i32, i32) {
    %c0_i32 = arith.constant 0 : i32
    %c0_i32_0 = arith.constant 0 : i32
    %c0_i32_1 = arith.constant 0 : i32
    return %c0_i32, %c0_i32_0 : i32, i32
  }
  func.func @transform_5(%arg0: i32) -> (i32, i32) {
    %c0_i32 = arith.constant 0 : i32
    %c0_i32_0 = arith.constant 0 : i32
    %c0_i32_1 = arith.constant 0 : i32
    return %c0_i32, %c0_i32_0 : i32, i32
  }
  func.func @transform_6(%arg0: i32) -> (i32, i32, i32) {
    %c0_i32 = arith.constant 0 : i32
    %c0_i32_0 = arith.constant 0 : i32
    %c0_i32_1 = arith.constant 0 : i32
    return %arg0, %c0_i32, %c0_i32_0 : i32, i32, i32
  }
}

</mosaic_0001>

<llo_original>
// kernel: apply.1
$region0: #{apply.1}
  #allocation0 [shape = 'u32[]', space=smem, size = 0x4, offset = 0x4, fixed_abs, tag = 'smem constant byte address 0x4 - core index']
  #allocation1 [shape = 'u32[144,128]{1,0:T(1,128)}', space=vmem, size = 0x12000, scoped, tag = 'internal scratch']
  %s0 = inlined_call_operand.hbm [shape: bf16[8,8,128], index: 0, kind: input, shape index: {}]
  %s1 = inlined_call_operand.hbm [shape: bf16[128,256], index: 1, kind: input, shape index: {}]
  %s2 = inlined_call_operand.vmem [shape: bf16[8,8], index: 2, kind: input, shape index: {}]
  %s3 = inlined_call_operand.vmem [shape: bf16[8,8], index: 3, kind: input, shape index: {}]
  %s4 = inlined_call_operand.vmem [shape: f32[1,128], index: 4, kind: input, shape index: {}]
  %s5 = inlined_call_operand.hbm [shape: f32[1,128], index: 5, kind: input, shape index: {}]
  %s6 = inlined_call_operand.hbm [shape: bf16[8,8,128], index: 6, kind: output, shape index: {}]
  %s7 = sld [smem:[#allocation0]]
  $region69: #{apply.1} parent=0
    _
  %s9 = ssub.s32 1, %s7
  %s10 = scalar_select 0, %s9, %s7
  $region1: #{apply.1} parent=0
    #allocation2 [shape = 'u8[4096]{0}', space=vmem, size = 0x1000, scoped, tag = 'input window, operand 0']
    #allocation3 [shape = 's32[2]{0}', space=sflag, size = 0x8, scoped, tag = 'scoped memory for apply.1']
    #allocation4 [shape = 's32[2]{0}', space=sflag, size = 0x8, scoped, tag = 'scoped memory for apply.1']
    #allocation5 [shape = 'u8[65536]{0}', space=vmem, size = 0x10000, scoped, tag = 'input window, operand 1, single buffered']
    #allocation6 [shape = 's32[1]{0}', space=sflag, size = 0x4, scoped, tag = 'scoped memory for apply.1']
    #allocation7 [shape = 'u8[512]{0}', space=vmem, size = 0x400, scoped, tag = 'input window, operand 5, single buffered']
    #allocation8 [shape = 'u8[4096]{0}', space=vmem, size = 0x1000, scoped, tag = 'output window, operand 0']
    %11 = vsyncpa [#allocation3], 0
    %s12 = scalar_lea.sflag [#allocation3], 1
    %13 = vsyncpa %s12, 0
    %14 = vsyncpa [#allocation6], 0
    %15 = vsyncpa [#allocation4], 0
    %s16 = scalar_lea.sflag [#allocation4], 1
    %17 = vsyncpa %s16, 0
    loop: start=0, step=1, limit=10
    $region2: #{apply.1} parent=1 // loop_pre_header
      _
    $region3: #{apply.1} parent=1 // loop_header
      %s19 = sphi 0, %s23
      %p20 = scmp.ge.s32.totalorder %s19, 10
      %s29 = sphi 0, %s31
      %s32 = sphi 0, %s29
      %s33 = sphi 0, %s32
      %s49 = sphi 0, %s33
      %s53 = sphi 0, %s53
      %s55 = sphi 0, %s53
      %s56 = sphi 0, %s55
      %s70 = sphi 0, %s56
      %s74 = sphi 0, %s74
      %s76 = sphi 0, %s74
      %s77 = sphi 0, %s76
      %s91 = sphi 0, %s77
      %s95 = sphi 0, %s95
      %s97 = sphi 0, %s95
      %s98 = sphi 0, %s97
      %s112 = sphi 0, %s98
      %s116 = sphi 0, %s116
      %s118 = sphi 0, %s116
      %s119 = sphi 0, %s118
      %s133 = sphi 0, %s119
      %s137 = sphi 0, %s137
      %s139 = sphi 0, %s137
      %s140 = sphi 0, %s139
      %s154 = sphi 0, %s140
      %s160 = sphi 0, %s162
      %s163 = sphi 0, %s160
      %s164 = sphi 0, %s163
      %s180 = sphi 0, %s164
    $region4: #{apply.1} parent=1 // loop_header_branch
      %22 = sbr.rel (%p20) target = $region8
    $region5: #{apply.1} parent=1 // loop_body
      %s24 = ssub.s32 %s19, 1
      %s25 = ssub.s32 %s19, 2
      %s26 = sadd.s32 %s19, 1
      %s27 = ssub.s32 %s19, %s26
      %p28 = scmp.eq.s32.totalorder %s27, 0
      %s30 = sadd.s32 %s29, 1
      %s31 = scalar_select %p28, %s29, %s30
      %p34 = pneg %p28
      %p35 = scmp.eq.s32.totalorder %s19, 7
      %p36 = por %p34, %p35
      %p37 = scmp.ne.s32.totalorder %s29, %s32
      %p38 = scmp.eq.s32.totalorder %s19, 0
      %p39 = por %p37, %p38
      %p40 = scmp.ne.s32.totalorder %s29, %s32
      %p41 = scmp.eq.s32.totalorder %s24, 7
      %p42 = por %p40, %p41
      %p43 = scmp.ne.s32.totalorder %s32, %s33
      %p44 = scmp.eq.s32.totalorder %s24, 0
      %p45 = por %p43, %p44
      %p46 = scmp.ne.s32.totalorder %s32, %s33
      %p47 = scmp.eq.s32.totalorder %s25, 7
      %p48 = por %p46, %p47
      %p50 = scmp.ne.s32.totalorder %s33, %s49
      %p51 = scmp.eq.s32.totalorder %s25, 0
      %p52 = por %p50, %p51
      %s54 = sadd.s32 %s53, 1
      %p57 = scmp.eq.s32.totalorder %s19, 7
      %p58 = scmp.ne.s32.totalorder %s53, %s55
      %p59 = scmp.eq.s32.totalorder %s19, 0
      %p60 = por %p58, %p59
      %p61 = scmp.ne.s32.totalorder %s53, %s55
      %p62 = scmp.eq.s32.totalorder %s24, 7
      %p63 = por %p61, %p62
      %p64 = scmp.ne.s32.totalorder %s55, %s56
      %p65 = scmp.eq.s32.totalorder %s24, 0
      %p66 = por %p64, %p65
      %p67 = scmp.ne.s32.totalorder %s55, %s56
      %p68 = scmp.eq.s32.totalorder %s25, 7
      %p69 = por %p67, %p68
      %p71 = scmp.ne.s32.totalorder %s56, %s70
      %p72 = scmp.eq.s32.totalorder %s25, 0
      %p73 = por %p71, %p72
      %s75 = sadd.s32 %s74, 1
      %p78 = scmp.eq.s32.totalorder %s19, 7
      %p79 = scmp.ne.s32.totalorder %s74, %s76
      %p80 = scmp.eq.s32.totalorder %s19, 0
      %p81 = por %p79, %p80
      %p82 = scmp.ne.s32.totalorder %s74, %s76
      %p83 = scmp.eq.s32.totalorder %s24, 7
      %p84 = por %p82, %p83
      %p85 = scmp.ne.s32.totalorder %s76, %s77
      %p86 = scmp.eq.s32.totalorder %s24, 0
      %p87 = por %p85, %p86
      %p88 = scmp.ne.s32.totalorder %s76, %s77
      %p89 = scmp.eq.s32.totalorder %s25, 7
      %p90 = por %p88, %p89
      %p92 = scmp.ne.s32.totalorder %s77, %s91
      %p93 = scmp.eq.s32.totalorder %s25, 0
      %p94 = por %p92, %p93
      %s96 = sadd.s32 %s95, 1
      %p99 = scmp.eq.s32.totalorder %s19, 7
      %p100 = scmp.ne.s32.totalorder %s95, %s97
      %p101 = scmp.eq.s32.totalorder %s19, 0
      %p102 = por %p100, %p101
      %p103 = scmp.ne.s32.totalorder %s95, %s97
      %p104 = scmp.eq.s32.totalorder %s24, 7
      %p105 = por %p103, %p104
      %p106 = scmp.ne.s32.totalorder %s97, %s98
      %p107 = scmp.eq.s32.totalorder %s24, 0
      %p108 = por %p106, %p107
      %p109 = scmp.ne.s32.totalorder %s97, %s98
      %p110 = scmp.eq.s32.totalorder %s25, 7
      %p111 = por %p109, %p110
      %p113 = scmp.ne.s32.totalorder %s98, %s112
      %p114 = scmp.eq.s32.totalorder %s25, 0
      %p115 = por %p113, %p114
      %s117 = sadd.s32 %s116, 1
      %p120 = scmp.eq.s32.totalorder %s19, 7
      %p121 = scmp.ne.s32.totalorder %s116, %s118
      %p122 = scmp.eq.s32.totalorder %s19, 0
      %p123 = por %p121, %p122
      %p124 = scmp.ne.s32.totalorder %s116, %s118
      %p125 = scmp.eq.s32.totalorder %s24, 7
      %p126 = por %p124, %p125
      %p127 = scmp.ne.s32.totalorder %s118, %s119
      %p128 = scmp.eq.s32.totalorder %s24, 0
      %p129 = por %p127, %p128
      %p130 = scmp.ne.s32.totalorder %s118, %s119
      %p131 = scmp.eq.s32.totalorder %s25, 7
      %p132 = por %p130, %p131
      %p134 = scmp.ne.s32.totalorder %s119, %s133
      %p135 = scmp.eq.s32.totalorder %s25, 0
      %p136 = por %p134, %p135
      %s138 = sadd.s32 %s137, 1
      %p141 = scmp.eq.s32.totalorder %s19, 7
      %p142 = scmp.ne.s32.totalorder %s137, %s139
      %p143 = scmp.eq.s32.totalorder %s19, 0
      %p144 = por %p142, %p143
      %p145 = scmp.ne.s32.totalorder %s137, %s139
      %p146 = scmp.eq.s32.totalorder %s24, 7
      %p147 = por %p145, %p146
      %p148 = scmp.ne.s32.totalorder %s139, %s140
      %p149 = scmp.eq.s32.totalorder %s24, 0
      %p150 = por %p148, %p149
      %p151 = scmp.ne.s32.totalorder %s139, %s140
      %p152 = scmp.eq.s32.totalorder %s25, 7
      %p153 = por %p151, %p152
      %p155 = scmp.ne.s32.totalorder %s140, %s154
      %p156 = scmp.eq.s32.totalorder %s25, 0
      %p157 = por %p155, %p156
      %s158 = ssub.s32 %s19, %s26
      %p159 = scmp.eq.s32.totalorder %s158, 0
      %s161 = sadd.s32 %s160, 1
      %s162 = scalar_select %p159, %s160, %s161
      %p165 = pneg %p159
      %p166 = scmp.eq.s32.totalorder %s19, 7
      %p167 = por %p165, %p166
      %p168 = scmp.ne.s32.totalorder %s160, %s163
      %p169 = scmp.eq.s32.totalorder %s19, 0
      %p170 = por %p168, %p169
      %p171 = scmp.ne.s32.totalorder %s160, %s163
      %p172 = scmp.eq.s32.totalorder %s24, 7
      %p173 = por %p171, %p172
      %p174 = scmp.ne.s32.totalorder %s163, %s164
      %p175 = scmp.eq.s32.totalorder %s24, 0
      %p176 = por %p174, %p175
      %p177 = scmp.ne.s32.totalorder %s163, %s164
      %p178 = scmp.eq.s32.totalorder %s25, 7
      %p179 = por %p177, %p178
      %p181 = scmp.ne.s32.totalorder %s164, %s180
      %p182 = scmp.eq.s32.totalorder %s25, 0
      %p183 = por %p181, %p182
      %p184 = scmp.le.s32.totalorder 1, %s19
      %p185 = scmp.lt.s32.totalorder %s19, 9
      %p186 = pnand %p184, %p185
      %p187 = pneg %p186
      // Predicated region
      $region9: #{apply.1} parent=5 // pred_check
        _
      $region10: #{apply.1} parent=5 // pred_check_branch
        %189 = sbr.rel (%p186) target = $region12
      $region11: #{apply.1} parent=5 // pred_region
        %s190 = ssub.s32 %s19, 1
        // Predicated region
        $region13: #{apply.1} parent=11 // pred_check
          %p191 = pneg %p66
        $region14: #{apply.1} parent=11 // pred_check_branch
          %193 = sbr.rel (%p191) target = $region16
        $region15: #{apply.1} parent=11 // pred_region
          %s195 = ssub.s32 2048, 2048
          %196 = vsyncadd [#allocation6], %s195
          %s197 = sshll.u32 [#allocation5], 4
          %s198 = int_to_ptr.vmem [resolvable:$true] %s197
          %203 = dma.hbm_to_vmem [thread:$0]  %s1, 2048, %s198, [#allocation6], 128, 128, 8
        $region16: #{apply.1} parent=11 // pred_fallthru
          _
        // Predicated region
        $region17: #{apply.1} parent=11 // pred_check
          %p204 = pneg %p87
        $region18: #{apply.1} parent=11 // pred_check_branch
          %206 = sbr.rel (%p204) target = $region20
        $region19: #{apply.1} parent=11 // pred_region
          _
        $region20: #{apply.1} parent=11 // pred_fallthru
          _
        // Predicated region
        $region21: #{apply.1} parent=11 // pred_check
          %p207 = pneg %p108
        $region22: #{apply.1} parent=11 // pred_check_branch
          %209 = sbr.rel (%p207) target = $region24
        $region23: #{apply.1} parent=11 // pred_region
          _
        $region24: #{apply.1} parent=11 // pred_fallthru
          _
        // Predicated region
        $region25: #{apply.1} parent=11 // pred_check
          %p210 = pneg %p129
        $region26: #{apply.1} parent=11 // pred_check_branch
          %212 = sbr.rel (%p210) target = $region28
        $region27: #{apply.1} parent=11 // pred_region
          _
        $region28: #{apply.1} parent=11 // pred_fallthru
          _
        // Predicated region
        $region29: #{apply.1} parent=11 // pred_check
          %p213 = pneg %p150
        $region30: #{apply.1} parent=11 // pred_check_branch
          %215 = sbr.rel (%p213) target = $region32
        $region31: #{apply.1} parent=11 // pred_region
          %s217 = ssub.s32 16, 16
          %218 = vsyncadd [#allocation6], %s217
          %s220 = sshll.u32 [#allocation7], 4
          %s221 = int_to_ptr.vmem [resolvable:$true] %s220
          %223 = dma.hbm_to_vmem [thread:$0]  %s5, 16, %s221, [#allocation6]
        $region32: #{apply.1} parent=11 // pred_fallthru
          _
      $region12: #{apply.1} parent=5 // pred_fallthru
        _
      %p224 = scmp.lt.s32.totalorder %s19, 8
      // Predicated region
      $region33: #{apply.1} parent=5 // pred_check
        %p225 = pneg %p224
      $region34: #{apply.1} parent=5 // pred_check_branch
        %227 = sbr.rel (%p225) target = $region36
      $region35: #{apply.1} parent=5 // pred_region
        // Predicated region
        $region37: #{apply.1} parent=35 // pred_check
          %p228 = pneg %p39
        $region38: #{apply.1} parent=35 // pred_check_branch
          %230 = sbr.rel (%p228) target = $region40
        $region39: #{apply.1} parent=35 // pred_region
          %s231 = sand.u32 %s29, 1
          %s232 = scalar_lea.sflag [#allocation3], %s231
          %s233 = sand.u32 %s29, 1
          %s234 = smul.addr %s233, 4
          %s235 = scalar_lea.vmem [#allocation2], %s234
          %s237 = ssub.s32 64, 64
          %238 = vsyncadd %s232, %s237
          %s239 = smul.addr %s19, 64
          %s240 = scalar_lea.hbm %s0, %s239
          %s242 = sshll.u32 %s235, 4
          %s243 = int_to_ptr.vmem [resolvable:$true] %s242
          %245 = dma.hbm_to_vmem [thread:$0]  %s240, 64, %s243, %s232
        $region40: #{apply.1} parent=35 // pred_fallthru
          _
      $region36: #{apply.1} parent=5 // pred_fallthru
        _
      %p246 = scmp.le.s32.totalorder 1, %s19
      %p247 = scmp.lt.s32.totalorder %s19, 9
      %p248 = pnand %p246, %p247
      %p249 = pneg %p248
      // Predicated region
      $region41: #{apply.1} parent=5 // pred_check
        _
      $region42: #{apply.1} parent=5 // pred_check_branch
        %251 = sbr.rel (%p248) target = $region44
      $region43: #{apply.1} parent=5 // pred_region
        %s252 = ssub.s32 %s19, 1
        %s253 = sand.u32 %s32, 1
        %s254 = scalar_lea.sflag [#allocation3], %s253
        %s255 = sand.u32 %s32, 1
        %s256 = smul.addr %s255, 4
        %s257 = scalar_lea.vmem [#allocation2], %s256
        // Predicated region
        $region45: #{apply.1} parent=43 // pred_check
          %p258 = pneg %p45
        $region46: #{apply.1} parent=43 // pred_check_branch
          %260 = sbr.rel (%p258) target = $region48
        $region47: #{apply.1} parent=43 // pred_region
          %261 = dma.done %s254, 64
        $region48: #{apply.1} parent=43 // pred_fallthru
          _
        // Predicated region
        $region49: #{apply.1} parent=43 // pred_check
          %p262 = pneg %p66
        $region50: #{apply.1} parent=43 // pred_check_branch
          %264 = sbr.rel (%p262) target = $region52
        $region51: #{apply.1} parent=43 // pred_region
          %265 = dma.done [#allocation6], 2048
        $region52: #{apply.1} parent=43 // pred_fallthru
          _
        // Predicated region
        $region53: #{apply.1} parent=43 // pred_check
          %p266 = pneg %p150
        $region54: #{apply.1} parent=43 // pred_check_branch
          %268 = sbr.rel (%p266) target = $region56
        $region55: #{apply.1} parent=43 // pred_region
          %269 = dma.done [#allocation6], 16
        $region56: #{apply.1} parent=43 // pred_fallthru
          _
        %s270 = sand.u32 %s32, 1
        %s271 = scalar_lea.sflag [#allocation3], %s270
        %s272 = sand.u32 %s32, 1
        %s273 = smul.addr %s272, 4
        %s274 = scalar_lea.vmem [#allocation2], %s273
        %p275 = pneg %p45
        %p276 = pneg %p42
        %p277 = pneg %p66
        %p278 = pneg %p63
        %p279 = pneg %p87
        %p280 = pneg %p84
        %p281 = pneg %p108
        %p282 = pneg %p105
        %p283 = pneg %p129
        %p284 = pneg %p126
        %p285 = pneg %p150
        %p286 = pneg %p147
        %p287 = pneg %p176
        %p288 = pneg %p173
        %s289 = sand.u32 %s163, 1
        %s290 = scalar_lea.sflag [#allocation4], %s289
        %s291 = sand.u32 %s163, 1
        %s292 = smul.addr %s291, 4
        %s293 = scalar_lea.vmem [#allocation8], %s292
        %v295 = vld [vmem:[%s257] sm:$0xf]
        %v296 = vld [vmem:[#allocation5] sm:$0xff]
        %v297 = vld [vmem:[#allocation5 + $0x8] sm:$0xff]
        %v298 = vld [vmem:[#allocation5 + $0x10] sm:$0xff]
        %v299 = vld [vmem:[#allocation5 + $0x18] sm:$0xff]
        %v300 = vld [vmem:[#allocation5 + $0x20] sm:$0xff]
        %v301 = vld [vmem:[#allocation5 + $0x28] sm:$0xff]
        %v302 = vld [vmem:[#allocation5 + $0x30] sm:$0xff]
        %v303 = vld [vmem:[#allocation5 + $0x38] sm:$0xff]
        %v304 = vld [vmem:[#allocation5 + $0x40] sm:$0xff]
        %v305 = vld [vmem:[#allocation5 + $0x48] sm:$0xff]
        %v306 = vld [vmem:[#allocation5 + $0x50] sm:$0xff]
        %v307 = vld [vmem:[#allocation5 + $0x58] sm:$0xff]
        %v308 = vld [vmem:[#allocation5 + $0x60] sm:$0xff]
        %v309 = vld [vmem:[#allocation5 + $0x68] sm:$0xff]
        %v310 = vld [vmem:[#allocation5 + $0x70] sm:$0xff]
        %v311 = vld [vmem:[#allocation5 + $0x78] sm:$0xff]
        %v328 = vunpack.c.l.b16 %v296
        %v329 = vunpack.c.h.b16 %v296
        %v330 = vunpack.c.l.b16 %v297
        %v331 = vunpack.c.h.b16 %v297
        %v332 = vunpack.c.l.b16 %v298
        %v333 = vunpack.c.h.b16 %v298
        %v334 = vunpack.c.l.b16 %v299
        %v335 = vunpack.c.h.b16 %v299
        %v336 = vunpack.c.l.b16 %v300
        %v337 = vunpack.c.h.b16 %v300
        %v338 = vunpack.c.l.b16 %v301
        %v339 = vunpack.c.h.b16 %v301
        %v340 = vunpack.c.l.b16 %v302
        %v341 = vunpack.c.h.b16 %v302
        %v342 = vunpack.c.l.b16 %v303
        %v343 = vunpack.c.h.b16 %v303
        %v344 = vunpack.c.l.b16 %v304
        %v345 = vunpack.c.h.b16 %v304
        %v346 = vunpack.c.l.b16 %v305
        %v347 = vunpack.c.h.b16 %v305
        %v348 = vunpack.c.l.b16 %v306
        %v349 = vunpack.c.h.b16 %v306
        %v350 = vunpack.c.l.b16 %v307
        %v351 = vunpack.c.h.b16 %v307
        %v352 = vunpack.c.l.b16 %v308
        %v353 = vunpack.c.h.b16 %v308
        %v354 = vunpack.c.l.b16 %v309
        %v355 = vunpack.c.h.b16 %v309
        %v356 = vunpack.c.l.b16 %v310
        %v357 = vunpack.c.h.b16 %v310
        %v358 = vunpack.c.l.b16 %v311
        %v359 = vunpack.c.h.b16 %v311
        %v360 = vpack.c.b16 %v330, %v328
        %v361 = vpack.c.b16 %v331, %v329
        %v362 = vpack.c.b16 %v334, %v332
        %v363 = vpack.c.b16 %v335, %v333
        %v364 = vpack.c.b16 %v338, %v336
        %v365 = vpack.c.b16 %v339, %v337
        %v366 = vpack.c.b16 %v342, %v340
        %v367 = vpack.c.b16 %v343, %v341
        %v368 = vpack.c.b16 %v346, %v344
        %v369 = vpack.c.b16 %v347, %v345
        %v370 = vpack.c.b16 %v350, %v348
        %v371 = vpack.c.b16 %v351, %v349
        %v372 = vpack.c.b16 %v354, %v352
        %v373 = vpack.c.b16 %v355, %v353
        %v374 = vpack.c.b16 %v358, %v356
        %v375 = vpack.c.b16 %v359, %v357
        %392 = vmatprep.subr.bf16.mxu0 %v375
        %393 = vmatpush1.bf16.msra.mxu0 %v374
        %394 = vmatprep.subr.bf16.mxu0 %v373
        %395 = vmatpush1.bf16.msra.mxu0 %v372
        %396 = vmatprep.subr.bf16.mxu0 %v371
        %397 = vmatpush1.bf16.msra.mxu0 %v370
        %398 = vmatprep.subr.bf16.mxu0 %v369
        %399 = vmatpush1.bf16.msra.mxu0 %v368
        %400 = vmatprep.subr.bf16.mxu0 %v367
        %401 = vmatpush1.bf16.msra.mxu0 %v366
        %402 = vmatprep.subr.bf16.mxu0 %v365
        %403 = vmatpush1.bf16.msra.mxu0 %v364
        %404 = vmatprep.subr.bf16.mxu0 %v363
        %405 = vmatpush1.bf16.msra.mxu0 %v362
        %406 = vmatprep.subr.bf16.mxu0 %v361
        %407 = vmatpush1.bf16.msra.mxu0 %v360
        %408 = vmatprep.subr.bf16.mxu0 0
        %409 = vmatpush2.bf16.msra.mxu0 0
        %410 = vmatprep.subr.bf16.mxu0 0
        %411 = vmatpush2.bf16.msra.mxu0 0
        %412 = vmatprep.subr.bf16.mxu0 0
        %413 = vmatpush2.bf16.msra.mxu0 0
        %414 = vmatprep.subr.bf16.mxu0 0
        %415 = vmatpush2.bf16.msra.mxu0 0
        %416 = vmatprep.subr.bf16.mxu0 0
        %417 = vmatpush2.bf16.msra.mxu0 0
        %418 = vmatprep.subr.bf16.mxu0 0
        %419 = vmatpush2.bf16.msra.mxu0 0
        %420 = vmatprep.subr.bf16.mxu0 0
        %421 = vmatpush2.bf16.msra.mxu0 0
        %422 = vmatprep.subr.bf16.mxu0 0
        %423 = vmatpush2.bf16.msra.mxu0 0
        %424 = vmatprep.mubr.bf16.mxu0 0
        %425 = vmatmul.mubr.bf16.gmra.mxu0 %v295
        %v426 = vpop.f32.mrf.mxu0
        %v427 = vadd.f32 0.0, %v426
        %v428 = vpop.f32.mrf.mxu0
        %v429 = vadd.f32 0.0, %v428
        %v430 = vpop.f32.mrf.mxu0
        %v431 = vpop.f32.mrf.mxu0
        %432 = vdwg.mxu0
        %v433 = vpack.c.bf16 %v427, %v427
        %v434 = vpack.c.bf16 %v429, %v429
        %v435 = vld [vmem:[%s2] sm:$0xf]
        %vm436 = vcmask 64512
        %v438 = vsel %vm436, %v435, 0
        %vm440 = vcmask 1043456
        %v442 = vsel %vm440, %v433, 0
        %444 = vmatprep.subr.bf16.mxu0 0
        %445 = vmatpush1.bf16.msra.mxu0 0
        %446 = vmatprep.subr.bf16.mxu0 0
        %447 = vmatpush1.bf16.msra.mxu0 0
        %448 = vmatprep.subr.bf16.mxu0 0
        %449 = vmatpush1.bf16.msra.mxu0 0
        %450 = vmatprep.subr.bf16.mxu0 0
        %451 = vmatpush1.bf16.msra.mxu0 0
        %452 = vmatprep.subr.bf16.mxu0 0
        %453 = vmatpush1.bf16.msra.mxu0 0
        %454 = vmatprep.subr.bf16.mxu0 0
        %455 = vmatpush1.bf16.msra.mxu0 0
        %456 = vmatprep.subr.bf16.mxu0 0
        %457 = vmatpush1.bf16.msra.mxu0 0
        %458 = vmatprep.subr.bf16.mxu0 0
        %459 = vmatpush1.bf16.msra.mxu0 %v442
        %460 = vmatprep.subr.bf16.mxu0 0
        %461 = vmatpush2.bf16.msra.mxu0 0
        %462 = vmatprep.subr.bf16.mxu0 0
        %463 = vmatpush2.bf16.msra.mxu0 0
        %464 = vmatprep.subr.bf16.mxu0 0
        %465 = vmatpush2.bf16.msra.mxu0 0
        %466 = vmatprep.subr.bf16.mxu0 0
        %467 = vmatpush2.bf16.msra.mxu0 0
        %468 = vmatprep.subr.bf16.mxu0 0
        %469 = vmatpush2.bf16.msra.mxu0 0
        %470 = vmatprep.subr.bf16.mxu0 0
        %471 = vmatpush2.bf16.msra.mxu0 0
        %472 = vmatprep.subr.bf16.mxu0 0
        %473 = vmatpush2.bf16.msra.mxu0 0
        %474 = vmatprep.subr.bf16.mxu0 0
        %475 = vmatpush2.bf16.msra.mxu0 0
        %476 = vmatprep.mubr.bf16.mxu0 0
        %477 = vmatmul.mubr.bf16.gmra.mxu0 %v438
        %v478 = vpop.f32.mrf.mxu0
        %v479 = vadd.f32 0.0, %v478
        %v480 = vpop.f32.mrf.mxu0
        %v481 = vpop.f32.mrf.mxu0
        %v482 = vpop.f32.mrf.mxu0
        %483 = vdwg.mxu0
        %v484 = vld [vmem:[%s3] sm:$0xf]
        %v486 = vsel %vm436, %v484, 0
        %v489 = vsel %vm440, %v434, 0
        %491 = vmatprep.subr.bf16.mxu0 0
        %492 = vmatpush1.bf16.msra.mxu0 0
        %493 = vmatprep.subr.bf16.mxu0 0
        %494 = vmatpush1.bf16.msra.mxu0 0
        %495 = vmatprep.subr.bf16.mxu0 0
        %496 = vmatpush1.bf16.msra.mxu0 0
        %497 = vmatprep.subr.bf16.mxu0 0
        %498 = vmatpush1.bf16.msra.mxu0 0
        %499 = vmatprep.subr.bf16.mxu0 0
        %500 = vmatpush1.bf16.msra.mxu0 0
        %501 = vmatprep.subr.bf16.mxu0 0
        %502 = vmatpush1.bf16.msra.mxu0 0
        %503 = vmatprep.subr.bf16.mxu0 0
        %504 = vmatpush1.bf16.msra.mxu0 0
        %505 = vmatprep.subr.bf16.mxu0 0
        %506 = vmatpush1.bf16.msra.mxu0 %v489
        %507 = vmatprep.subr.bf16.mxu0 0
        %508 = vmatpush2.bf16.msra.mxu0 0
        %509 = vmatprep.subr.bf16.mxu0 0
        %510 = vmatpush2.bf16.msra.mxu0 0
        %511 = vmatprep.subr.bf16.mxu0 0
        %512 = vmatpush2.bf16.msra.mxu0 0
        %513 = vmatprep.subr.bf16.mxu0 0
        %514 = vmatpush2.bf16.msra.mxu0 0
        %515 = vmatprep.subr.bf16.mxu0 0
        %516 = vmatpush2.bf16.msra.mxu0 0
        %517 = vmatprep.subr.bf16.mxu0 0
        %518 = vmatpush2.bf16.msra.mxu0 0
        %519 = vmatprep.subr.bf16.mxu0 0
        %520 = vmatpush2.bf16.msra.mxu0 0
        %521 = vmatprep.subr.bf16.mxu0 0
        %522 = vmatpush2.bf16.msra.mxu0 0
        %523 = vmatprep.mubr.bf16.mxu0 0
        %524 = vmatmul.mubr.bf16.gmra.mxu0 %v486
        %v525 = vpop.f32.mrf.mxu0
        %v526 = vadd.f32 0.0, %v525
        %v527 = vpop.f32.mrf.mxu0
        %v528 = vpop.f32.mrf.mxu0
        %v529 = vpop.f32.mrf.mxu0
        %530 = vdwg.mxu0
        %v531 = vsub.f32 %v479, %v526
        %v532 = vunpack.c.l.bf16 %v295
        %v533 = vadd.f32 %v532, %v531
        %534 = vadd.xlane.f32.xlu0 %v533
        %v535 = vpop.xlane.xlu0 %534
        %v536 = vrcp.pop 128.0
        %v537 = vmul.f32 %v535, %v536
        %v538 = vsub.f32 %v533, %v537
        %v539 = vmul.f32 %v538, %v538
        %540 = vadd.xlane.f32.xlu0 %v539
        %v541 = vpop.xlane.xlu0 %540
        %v542 = vmul.f32 %v541, %v536
        %v543 = vadd.f32 %v542, 1e-05
        %v544 = vrsqrt.pop %v543
        %v545 = vmul.f32 %v538, %v544
        %v546 = vld [vmem:[%s4] sm:$0x1]
        %v548 = vlaneseq
        %v549 = vshrl.u32 %v548, 7
        %v550 = vsub.s32 0, %v549
        %v551 = vrot.slane %v546, %v550
        %v553 = vmul.f32 %v545, %v551
        %v554 = vld [vmem:[#allocation7] sm:$0x1]
        %v556 = vlaneseq
        %v557 = vshrl.u32 %v556, 7
        %v558 = vsub.s32 0, %v557
        %v559 = vrot.slane %v554, %v558
        %v561 = vadd.f32 %v553, %v559
        %v562 = vpack.c.bf16 %v561, %v561
        %563 = vst [vmem:[%s293] sm:$0xf] %v562
        %s564 = sand.u32 %s163, 1
        %s565 = scalar_lea.sflag [#allocation4], %s564
        %s566 = sand.u32 %s163, 1
        %s567 = smul.addr %s566, 4
        %s568 = scalar_lea.vmem [#allocation8], %s567
        // Predicated region
        $region57: #{apply.1} parent=43 // pred_check
          %p569 = pneg %p173
        $region58: #{apply.1} parent=43 // pred_check_branch
          %571 = sbr.rel (%p569) target = $region60
        $region59: #{apply.1} parent=43 // pred_region
          %s573 = ssub.s32 64, 64
          %574 = vsyncadd %s565, %s573
          %s575 = smul.addr %s24, 64
          %s576 = scalar_lea.hbm %s6, %s575
          %s578 = sshll.u32 %s568, 4
          %s579 = int_to_ptr.vmem [resolvable:$true] %s578
          %581 = dma.vmem_to_hbm [thread:$0]  %s579, 64, %s576, %s565
        $region60: #{apply.1} parent=43 // pred_fallthru
          _
      $region44: #{apply.1} parent=5 // pred_fallthru
        _
      %p582 = scmp.le.s32.totalorder 2, %s19
      // Predicated region
      $region61: #{apply.1} parent=5 // pred_check
        %p583 = pneg %p582
      $region62: #{apply.1} parent=5 // pred_check_branch
        %585 = sbr.rel (%p583) target = $region64
      $region63: #{apply.1} parent=5 // pred_region
        %s586 = ssub.s32 %s19, 2
        // Predicated region
        $region65: #{apply.1} parent=63 // pred_check
          %p587 = pneg %p179
        $region66: #{apply.1} parent=63 // pred_check_branch
          %589 = sbr.rel (%p587) target = $region68
        $region67: #{apply.1} parent=63 // pred_region
          %s590 = sand.u32 %s164, 1
          %s591 = scalar_lea.sflag [#allocation4], %s590
          %s592 = sand.u32 %s164, 1
          %s593 = smul.addr %s592, 4
          %s594 = scalar_lea.vmem [#allocation8], %s593
          %595 = dma.done %s591, 64
        $region68: #{apply.1} parent=63 // pred_fallthru
          _
      $region64: #{apply.1} parent=5 // pred_fallthru
        _
    $region6: #{apply.1} parent=1 // loop_footer
      %s23 = sadd.s32 1, %s19
    $region7: #{apply.1} parent=1 // loop_footer_branch
      %18 = sbr.rel target = $region3
    $region8: #{apply.1} parent=1 // loop_exit
      _
    %596 = vsyncpa [#allocation3], 1
    %s597 = scalar_lea.sflag [#allocation3], 1
    %598 = vsyncpa %s597, 1
    %599 = vsyncpa [#allocation6], 1
    %600 = vsyncpa [#allocation4], 1
    %s601 = scalar_lea.sflag [#allocation4], 1
    %602 = vsyncpa %s601, 1

</llo_original>
